<compile_context>
chip_gen: v7x
topology: tpu7x:2x2x1
jax: 0.10.0
libtpu: 0.0.40
codegen_flags: <defaults>
</compile_context>

<pallas_src>
import jax
import jax.numpy as jnp
from jax.experimental import pallas as pl
from jax.experimental.pallas import tpu as pltpu

# ----------------------------- configuration -------------------------------
B = 2               # batch (example)
FRAME_LEN = 128     # samples per frame (lane-aligned)
N_FRAMES = 8        # frames per clip (sublane-aligned)
T = FRAME_LEN * N_FRAMES
N_FEAT = 32         # filterbank outputs per clip
HIDDEN = 32         # classifier hidden width
N_CLASSES = 4       # classifier outputs
GATE_THR = 0.01     # noise-gate threshold used by the "remover"

HIDDEN_PAD = 128    # hidden width zero-padded to full lanes
OUT_PAD = 128       # lane-dense logits slab; wrapper slices [:, :N_CLASSES]


def _round_up(x, m):
    return ((x + m - 1) // m) * m


def pipeline_kernel(frames_ref, wfeat_ref, badj_ref, w2_ref, b2_ref, out_ref):
    # frames_ref : (bb, N_FRAMES, FRAME_LEN) f32  -- pre-shaped by wrapper
    x = frames_ref[...]

    # ---- remover: per-clip DC removal + noise gate (VPU, row-local) ----
    dc = jnp.sum(x, axis=2, keepdims=True)            # lane reduce
    dc = jnp.sum(dc, axis=1, keepdims=True) * (1.0 / T)
    x = x - dc
    x = jnp.where(jnp.abs(x) > GATE_THR, x, 0.0)      # compare + select

    # ---- feat_extractor: frame-mean commuted before the (linear) filterbank;
    #      the 1/N_FRAMES, the scaler and the first Linear are all folded into
    #      wfeat/badj on the host, so a single matmul remains. ----
    sum_frames = jnp.sum(x, axis=1)                   # (bb, FRAME_LEN)

    h = jnp.dot(sum_frames, wfeat_ref[...],
                preferred_element_type=jnp.float32) + badj_ref[...]
    h = jnp.maximum(h, 0.0)

    # ---- clf second Linear (columns padded to 128 -> lane-dense store) ----
    logits = jnp.dot(h, w2_ref[...],
                     preferred_element_type=jnp.float32) + b2_ref[...]
    out_ref[...] = logits.astype(out_ref.dtype)


def classifier_pipeline(audio, fb, mu, sigma, w1, b1, w2, b2, *, block_b=1024):
    """audio: (B, T) f32. Parameters match the original (unfolded) pipeline."""
    bsz, t = audio.shape
    assert t == N_FRAMES * FRAME_LEN

    # -------- host-side constant folding (one-time per parameter set) -------
    # h = ((frames_sum/N_FRAMES @ fb - mu) / sigma) @ w1 + b1
    #   = frames_sum @ ((fb * inv_sigma) @ w1 / N_FRAMES) + (b1 - (mu*inv_sigma) @ w1)
    inv_sigma = 1.0 / sigma                                       # (1, N_FEAT)
    w_feat = ((fb * inv_sigma) @ w1) * (1.0 / N_FRAMES)           # (FRAME_LEN, HIDDEN)
    b_adj = b1 - (mu * inv_sigma) @ w1                            # (1, HIDDEN)

    # zero-pad hidden 32->128 and classes 4->128 so every classifier tensor is
    # lane-dense: full MXU passes and unmasked full-vreg output stores.
    w_feat_p = jnp.zeros((FRAME_LEN, HIDDEN_PAD), jnp.float32).at[:, :HIDDEN].set(w_feat)
    b_adj_p = jnp.zeros((1, HIDDEN_PAD), jnp.float32).at[:, :HIDDEN].set(b_adj)
    w2_p = jnp.zeros((HIDDEN_PAD, OUT_PAD), jnp.float32).at[:HIDDEN, :N_CLASSES].set(w2)
    b2_p = jnp.zeros((1, OUT_PAD), jnp.float32).at[:, :N_CLASSES].set(b2)

    # -------- pre-shape audio so the kernel never relayouts ------------------
    frames = audio.reshape(bsz, N_FRAMES, FRAME_LEN)   # free leading-dim split

    # -------- batch tiling ---------------------------------------------------
    block_b = _round_up(max(block_b, 8), 8)            # keep bb a multiple of 8
    bb = min(block_b, _round_up(bsz, 8))
    # give the "parallel" batch axis >= 2 grid steps whenever possible so both
    # v7x TensorCores get work (no effect for tiny batches).
    if bb > 8 and pl.cdiv(bsz, bb) < 2:
        bb = _round_up(pl.cdiv(bsz, 2), 8)
    n_steps = pl.cdiv(bsz, bb)

    # No full-batch pad: large batches run unpadded and the ragged final input
    # block is masked by Pallas (rows are independent; tail rows are discarded
    # by the wrapper slice).  Only the degenerate bb > bsz case pads (<= 7 rows).
    if bb > bsz:
        frames = jnp.pad(frames, ((0, bb - bsz), (0, 0), (0, 0)))

    out_rows = n_steps * bb        # output padded to whole blocks (tiny tensor)

    # scoped VMEM: 2x double-buffered input tile + ~2x elementwise temps + slack
    vmem_limit = min(4 * bb * N_FRAMES * FRAME_LEN * 4 + (4 << 20), 48 << 20)

    cost = pl.CostEstimate(
        flops=bsz * (3 * T + N_FRAMES * FRAME_LEN
                     + 2 * FRAME_LEN * HIDDEN_PAD + 2 * HIDDEN_PAD * OUT_PAD),
        transcendentals=0,
        bytes_accessed=bsz * T * 4 + out_rows * OUT_PAD * 4,
    )

    out = pl.pallas_call(
        pipeline_kernel,
        out_shape=jax.ShapeDtypeStruct((out_rows, OUT_PAD), jnp.float32),
        grid_spec=pltpu.PrefetchScalarGridSpec(
            num_scalar_prefetch=0,
            grid=(n_steps,),
            in_specs=[
                # audio chunk: walks the batch axis
                pl.BlockSpec((bb, N_FRAMES, FRAME_LEN), lambda i: (i, 0, 0)),
                # parameters: constant block -> stay VMEM-resident across steps
                pl.BlockSpec((FRAME_LEN, HIDDEN_PAD), lambda i: (0, 0)),
                pl.BlockSpec((1, HIDDEN_PAD), lambda i: (0, 0)),
                pl.BlockSpec((HIDDEN_PAD, OUT_PAD), lambda i: (0, 0)),
                pl.BlockSpec((1, OUT_PAD), lambda i: (0, 0)),
            ],
            out_specs=pl.BlockSpec((bb, OUT_PAD), lambda i: (i, 0)),
        ),
        compiler_params=pltpu.CompilerParams(
            dimension_semantics=("parallel",),     # shards batch over TCs on v7x
            vmem_limit_bytes=vmem_limit,           # v5e default 16 MiB is too small
        ),
        cost_estimate=cost,
    )(frames, w_feat_p, b_adj_p, w2_p, b2_p)

    return out[:bsz, :N_CLASSES]


if __name__ == "__main__":
    key = jax.random.PRNGKey(0)
    k_audio, k_fb, k_mu, k_sig, k_w1, k_b1, k_w2, k_b2 = jax.random.split(key, 8)

    # deterministic synthetic inputs / parameters (small example shapes)
    audio = jax.random.normal(k_audio, (B, T), dtype=jnp.float32) * 0.1
    fb    = jax.random.normal(k_fb, (FRAME_LEN, N_FEAT), dtype=jnp.float32) * 0.05
    mu    = jax.random.normal(k_mu, (1, N_FEAT), dtype=jnp.float32) * 0.01
    sigma = jax.random.uniform(k_sig, (1, N_FEAT), dtype=jnp.float32,
                               minval=0.5, maxval=1.5)
    w1    = jax.random.normal(k_w1, (N_FEAT, HIDDEN), dtype=jnp.float32) * 0.1
    b1    = jax.random.normal(k_b1, (1, HIDDEN), dtype=jnp.float32) * 0.01
    w2    = jax.random.normal(k_w2, (HIDDEN, N_CLASSES), dtype=jnp.float32) * 0.1
    b2    = jax.random.normal(k_b2, (1, N_CLASSES), dtype=jnp.float32) * 0.01

    out = classifier_pipeline(audio, fb, mu, sigma, w1, b1, w2, b2)
    jax.block_until_ready(out)

    # pure-JAX reference of the UNFOLDED pipeline (remover->feat->scaler->clf)
    x = audio - jnp.mean(audio, axis=-1, keepdims=True)
    x = jnp.where(jnp.abs(x) > GATE_THR, x, 0.0)
    feats = jnp.mean(x.reshape(B, N_FRAMES, FRAME_LEN) @ fb, axis=1)
    scaled = (feats - mu) / sigma
    ref = jnp.maximum(scaled @ w1 + b1, 0.0) @ w2 + b2
    assert jnp.allclose(out, ref, atol=1e-4, rtol=1e-4), "mismatch vs reference"

    print("KERNEL_OK")
</pallas_src>

<mosaic_0001>
module attributes {stable_mosaic.version = 11 : i64} {
  func.func @pipeline_kernel(%arg0: i32, %arg1: memref<8x8x128xf32, #tpu.memory_space<vmem>>, %arg2: memref<128x128xf32, #tpu.memory_space<vmem>>, %arg3: memref<1x128xf32, #tpu.memory_space<vmem>>, %arg4: memref<128x128xf32, #tpu.memory_space<vmem>>, %arg5: memref<1x128xf32, #tpu.memory_space<vmem>>, %arg6: memref<8x128xf32, #tpu.memory_space<vmem>>) attributes {dimension_semantics = [#tpu.dimension_semantics<parallel>], iteration_bounds = array<i64: 1>, scalar_prefetch = 0 : i64, scratch_operands = 0 : i64, tpu.core_type = #tpu.core_type<tc>, window_params = [{transform_indices = @transform_0, window_bounds = array<i64: 8, 8, 128>}, {pipeline_mode = #tpu.pipeline_mode<synchronous>, transform_indices = @transform_1, window_bounds = array<i64: 128, 128>}, {pipeline_mode = #tpu.pipeline_mode<synchronous>, transform_indices = @transform_2, window_bounds = array<i64: 1, 128>}, {pipeline_mode = #tpu.pipeline_mode<synchronous>, transform_indices = @transform_3, window_bounds = array<i64: 128, 128>}, {pipeline_mode = #tpu.pipeline_mode<synchronous>, transform_indices = @transform_4, window_bounds = array<i64: 1, 128>}, {transform_indices = @transform_5, window_bounds = array<i64: 8, 128>}]} {
    %c0 = arith.constant 0 : index
    %c0_0 = arith.constant 0 : index
    %c0_1 = arith.constant 0 : index
    %0 = vector.load %arg1[%c0, %c0_0, %c0_1] : memref<8x8x128xf32, #tpu.memory_space<vmem>>, vector<8x8x128xf32>
    %cst = arith.constant dense<0.000000e+00> : vector<8x8xf32>
    %1 = vector.multi_reduction <add>, %0, %cst [2] : vector<8x8x128xf32> to vector<8x8xf32>
    %2 = vector.shape_cast %1 : vector<8x8xf32> to vector<8x8x1xf32>
    %cst_2 = arith.constant dense<0.000000e+00> : vector<8x1xf32>
    %3 = vector.multi_reduction <add>, %2, %cst_2 [1] : vector<8x8x1xf32> to vector<8x1xf32>
    %4 = vector.shape_cast %3 : vector<8x1xf32> to vector<8x1x1xf32>
    %cst_3 = arith.constant 9.765625E-4 : f32
    %5 = vector.broadcast %cst_3 : f32 to vector<8x1x1xf32>
    %6 = arith.mulf %4, %5 : vector<8x1x1xf32>
    %7 = vector.broadcast %6 : vector<8x1x1xf32> to vector<8x8x128xf32>
    %8 = arith.subf %0, %7 : vector<8x8x128xf32>
    %9 = math.absf %8 : vector<8x8x128xf32>
    %cst_4 = arith.constant 0.00999999977 : f32
    %10 = vector.broadcast %cst_4 : f32 to vector<8x8x128xf32>
    %11 = arith.cmpf ogt, %9, %10 : vector<8x8x128xf32>
    %cst_5 = arith.constant 0.000000e+00 : f32
    %12 = vector.broadcast %cst_5 : f32 to vector<8x8x128xf32>
    %13 = arith.select %11, %8, %12 : vector<8x8x128xi1>, vector<8x8x128xf32>
    %cst_6 = arith.constant dense<0.000000e+00> : vector<8x128xf32>
    %14 = vector.multi_reduction <add>, %13, %cst_6 [1] : vector<8x8x128xf32> to vector<8x128xf32>
    %c0_7 = arith.constant 0 : index
    %c0_8 = arith.constant 0 : index
    %15 = vector.load %arg2[%c0_7, %c0_8] : memref<128x128xf32, #tpu.memory_space<vmem>>, vector<128x128xf32>
    %cst_9 = arith.constant dense<0.000000e+00> : vector<8x128xf32>
    %16 = tpu.matmul %14, %15, %cst_9 {dimension_numbers = #tpu.dot_dimension_numbers<[1], [0], [0], [1], [0, 0, 1, 1], [], []>} : vector<8x128xf32>, vector<128x128xf32>, vector<8x128xf32> -> vector<8x128xf32>
    %c0_10 = arith.constant 0 : index
    %c0_11 = arith.constant 0 : index
    %17 = vector.load %arg3[%c0_10, %c0_11] : memref<1x128xf32, #tpu.memory_space<vmem>>, vector<1x128xf32>
    %18 = vector.broadcast %17 : vector<1x128xf32> to vector<8x128xf32>
    %19 = arith.addf %16, %18 : vector<8x128xf32>
    %cst_12 = arith.constant 0.000000e+00 : f32
    %20 = vector.broadcast %cst_12 : f32 to vector<8x128xf32>
    %21 = arith.maximumf %19, %20 : vector<8x128xf32>
    %c0_13 = arith.constant 0 : index
    %c0_14 = arith.constant 0 : index
    %22 = vector.load %arg4[%c0_13, %c0_14] : memref<128x128xf32, #tpu.memory_space<vmem>>, vector<128x128xf32>
    %cst_15 = arith.constant dense<0.000000e+00> : vector<8x128xf32>
    %23 = tpu.matmul %21, %22, %cst_15 {dimension_numbers = #tpu.dot_dimension_numbers<[1], [0], [0], [1], [0, 0, 1, 1], [], []>} : vector<8x128xf32>, vector<128x128xf32>, vector<8x128xf32> -> vector<8x128xf32>
    %c0_16 = arith.constant 0 : index
    %c0_17 = arith.constant 0 : index
    %24 = vector.load %arg5[%c0_16, %c0_17] : memref<1x128xf32, #tpu.memory_space<vmem>>, vector<1x128xf32>
    %25 = vector.broadcast %24 : vector<1x128xf32> to vector<8x128xf32>
    %26 = arith.addf %23, %25 : vector<8x128xf32>
    %c0_18 = arith.constant 0 : index
    %c0_19 = arith.constant 0 : index
    %27 = vector.load %arg6[%c0_18, %c0_19] : memref<8x128xf32, #tpu.memory_space<vmem>>, vector<8x128xf32>
    tpu.vector_store %arg6[%c0_18, %c0_19], %26 {strides = array<i32>} : memref<8x128xf32, #tpu.memory_space<vmem>>, vector<8x128xf32>,
    return
  }
  func.func @transform_0(%arg0: i32) -> (i32, i32, i32) {
    %c0_i32 = arith.constant 0 : i32
    %c0_i32_0 = arith.constant 0 : i32
    %c0_i32_1 = arith.constant 0 : i32
    return %arg0, %c0_i32, %c0_i32_0 : i32, i32, i32
  }
  func.func @transform_1(%arg0: i32) -> (i32, i32) {
    %c0_i32 = arith.constant 0 : i32
    %c0_i32_0 = arith.constant 0 : i32
    %c0_i32_1 = arith.constant 0 : i32
    return %c0_i32, %c0_i32_0 : i32, i32
  }
  func.func @transform_2(%arg0: i32) -> (i32, i32) {
    %c0_i32 = arith.constant 0 : i32
    %c0_i32_0 = arith.constant 0 : i32
    %c0_i32_1 = arith.constant 0 : i32
    return %c0_i32, %c0_i32_0 : i32, i32
  }
  func.func @transform_3(%arg0: i32) -> (i32, i32) {
    %c0_i32 = arith.constant 0 : i32
    %c0_i32_0 = arith.constant 0 : i32
    %c0_i32_1 = arith.constant 0 : i32
    return %c0_i32, %c0_i32_0 : i32, i32
  }
  func.func @transform_4(%arg0: i32) -> (i32, i32) {
    %c0_i32 = arith.constant 0 : i32
    %c0_i32_0 = arith.constant 0 : i32
    %c0_i32_1 = arith.constant 0 : i32
    return %c0_i32, %c0_i32_0 : i32, i32
  }
  func.func @transform_5(%arg0: i32) -> (i32, i32) {
    %c0_i32 = arith.constant 0 : i32
    %c0_i32_0 = arith.constant 0 : i32
    return %arg0, %c0_i32 : i32, i32
  }
}

</mosaic_0001>

<llo_original>
// kernel: tpu_custom_call.1
$region0: #{tpu_custom_call.1}
  #allocation0 [shape = 'u32[]', space=smem, size = 0x4, offset = 0x4, fixed_abs, tag = 'smem constant byte address 0x4 - core index']
  #allocation1 [shape = 'u32[144,128]{1,0:T(1,128)}', space=vmem, size = 0x12000, scoped, tag = 'internal scratch']
  %s0 = inlined_call_operand.hbm [shape: f32[8,8,128], index: 0, kind: input, shape index: {}]
  %s1 = inlined_call_operand.hbm [shape: f32[128,128], index: 1, kind: input, shape index: {}]
  %s2 = inlined_call_operand.vmem [shape: f32[1,128], index: 2, kind: input, shape index: {}]
  %s3 = inlined_call_operand.hbm [shape: f32[128,128], index: 3, kind: input, shape index: {}]
  %s4 = inlined_call_operand.vmem [shape: f32[1,128], index: 4, kind: input, shape index: {}]
  %s5 = inlined_call_operand.hbm [shape: f32[8,128], index: 5, kind: output, shape index: {}]
  %s6 = sld [smem:[#allocation0]]
  $region42: #{tpu_custom_call.1} parent=0
    _
  %s8 = ssub.s32 1, %s6
  %s9 = scalar_select 0, %s8, %s6
  $region1: #{tpu_custom_call.1} parent=0
    #allocation2 [shape = 'u8[32768]{0}', space=vmem, size = 0x8000, scoped, tag = 'input window, operand 0, single buffered']
    #allocation3 [shape = 's32[1]{0}', space=sflag, size = 0x4, scoped, tag = 'scoped memory for tpu_custom_call.1']
    #allocation4 [shape = 's32[1]{0}', space=sflag, size = 0x4, scoped, tag = 'scoped memory for tpu_custom_call.1']
    #allocation5 [shape = 'u8[65536]{0}', space=vmem, size = 0x10000, scoped, tag = 'input window, operand 1, single buffered']
    #allocation6 [shape = 's32[1]{0}', space=sflag, size = 0x4, scoped, tag = 'scoped memory for tpu_custom_call.1']
    #allocation7 [shape = 'u8[65536]{0}', space=vmem, size = 0x10000, scoped, tag = 'input window, operand 3, single buffered']
    #allocation8 [shape = 'u8[4096]{0}', space=vmem, size = 0x1000, scoped, tag = 'output window, operand 0, single buffered']
    %10 = vsyncpa [#allocation3], 0
    %11 = vsyncpa [#allocation6], 0
    %12 = vsyncpa [#allocation4], 0
    // Predicated region
    $region2: #{tpu_custom_call.1} parent=1 // pred_check
      _
    $region3: #{tpu_custom_call.1} parent=1 // pred_check_branch
      %14 = sbr.rel (0) target = $region5
    $region4: #{tpu_custom_call.1} parent=1 // pred_region
      %s16 = ssub.s32 1024, 1024
      %17 = vsyncadd [#allocation3], %s16
      %s18 = sshll.u32 [#allocation2], 4
      %s19 = int_to_ptr.vmem [resolvable:$true] %s18
      %24 = dma.hbm_to_vmem [thread:$0]  %s0, 1024, %s19, [#allocation3], 128, 128, 8
    $region5: #{tpu_custom_call.1} parent=1 // pred_fallthru
      _
    // Predicated region
    $region6: #{tpu_custom_call.1} parent=1 // pred_check
      _
    $region7: #{tpu_custom_call.1} parent=1 // pred_check_branch
      %26 = sbr.rel (0) target = $region9
    $region8: #{tpu_custom_call.1} parent=1 // pred_region
      %s28 = ssub.s32 2048, 2048
      %29 = vsyncadd [#allocation6], %s28
      %s30 = sshll.u32 [#allocation5], 4
      %s31 = int_to_ptr.vmem [resolvable:$true] %s30
      %36 = dma.hbm_to_vmem [thread:$0]  %s1, 2048, %s31, [#allocation6], 128, 128, 8
    $region9: #{tpu_custom_call.1} parent=1 // pred_fallthru
      _
    // Predicated region
    $region10: #{tpu_custom_call.1} parent=1 // pred_check
      _
    $region11: #{tpu_custom_call.1} parent=1 // pred_check_branch
      %38 = sbr.rel (0) target = $region13
    $region12: #{tpu_custom_call.1} parent=1 // pred_region
      _
    $region13: #{tpu_custom_call.1} parent=1 // pred_fallthru
      _
    // Predicated region
    $region14: #{tpu_custom_call.1} parent=1 // pred_check
      _
    $region15: #{tpu_custom_call.1} parent=1 // pred_check_branch
      %40 = sbr.rel (0) target = $region17
    $region16: #{tpu_custom_call.1} parent=1 // pred_region
      %s42 = ssub.s32 2048, 2048
      %43 = vsyncadd [#allocation6], %s42
      %s44 = sshll.u32 [#allocation7], 4
      %s45 = int_to_ptr.vmem [resolvable:$true] %s44
      %50 = dma.hbm_to_vmem [thread:$0]  %s3, 2048, %s45, [#allocation6], 128, 128, 8
    $region17: #{tpu_custom_call.1} parent=1 // pred_fallthru
      _
    // Predicated region
    $region18: #{tpu_custom_call.1} parent=1 // pred_check
      _
    $region19: #{tpu_custom_call.1} parent=1 // pred_check_branch
      %52 = sbr.rel (0) target = $region21
    $region20: #{tpu_custom_call.1} parent=1 // pred_region
      _
    $region21: #{tpu_custom_call.1} parent=1 // pred_fallthru
      _
    // Predicated region
    $region22: #{tpu_custom_call.1} parent=1 // pred_check
      _
    $region23: #{tpu_custom_call.1} parent=1 // pred_check_branch
      %54 = sbr.rel (0) target = $region25
    $region24: #{tpu_custom_call.1} parent=1 // pred_region
      %55 = dma.done [#allocation3], 1024
    $region25: #{tpu_custom_call.1} parent=1 // pred_fallthru
      _
    // Predicated region
    $region26: #{tpu_custom_call.1} parent=1 // pred_check
      _
    $region27: #{tpu_custom_call.1} parent=1 // pred_check_branch
      %57 = sbr.rel (0) target = $region29
    $region28: #{tpu_custom_call.1} parent=1 // pred_region
      %58 = dma.done [#allocation6], 2048
    $region29: #{tpu_custom_call.1} parent=1 // pred_fallthru
      _
    // Predicated region
    $region30: #{tpu_custom_call.1} parent=1 // pred_check
      _
    $region31: #{tpu_custom_call.1} parent=1 // pred_check_branch
      %60 = sbr.rel (0) target = $region33
    $region32: #{tpu_custom_call.1} parent=1 // pred_region
      %61 = dma.done [#allocation6], 2048
    $region33: #{tpu_custom_call.1} parent=1 // pred_fallthru
      _
    %v62 = vld [vmem:[#allocation2] sm:$0xff]
    %v63 = vld [vmem:[#allocation2 + $0x8] sm:$0xff]
    %v64 = vld [vmem:[#allocation2 + $0x10] sm:$0xff]
    %v65 = vld [vmem:[#allocation2 + $0x18] sm:$0xff]
    %v66 = vld [vmem:[#allocation2 + $0x20] sm:$0xff]
    %v67 = vld [vmem:[#allocation2 + $0x28] sm:$0xff]
    %v68 = vld [vmem:[#allocation2 + $0x30] sm:$0xff]
    %v69 = vld [vmem:[#allocation2 + $0x38] sm:$0xff]
    %70 = vadd.xlane.f32.xlu0 %v62
    %v71 = vpop.xlane.xlu0 %70
    %72 = vadd.xlane.f32.xlu0 %v63
    %v73 = vpop.xlane.xlu0 %72
    %74 = vadd.xlane.f32.xlu0 %v64
    %v75 = vpop.xlane.xlu0 %74
    %76 = vadd.xlane.f32.xlu0 %v65
    %v77 = vpop.xlane.xlu0 %76
    %78 = vadd.xlane.f32.xlu0 %v66
    %v79 = vpop.xlane.xlu0 %78
    %80 = vadd.xlane.f32.xlu0 %v67
    %v81 = vpop.xlane.xlu0 %80
    %82 = vadd.xlane.f32.xlu0 %v68
    %v83 = vpop.xlane.xlu0 %82
    %84 = vadd.xlane.f32.xlu0 %v69
    %v85 = vpop.xlane.xlu0 %84
    %v86 = vrot.slane %v71, 4
    %v87 = vadd.f32 %v71, %v86
    %v88 = vrot.slane %v87, 2
    %v89 = vadd.f32 %v87, %v88
    %v90 = vrot.slane %v89, 1
    %v91 = vadd.f32 %v89, %v90
    %v92 = vrot.slane %v73, 4
    %v93 = vadd.f32 %v73, %v92
    %v94 = vrot.slane %v93, 2
    %v95 = vadd.f32 %v93, %v94
    %v96 = vrot.slane %v95, 1
    %v97 = vadd.f32 %v95, %v96
    %v98 = vrot.slane %v75, 4
    %v99 = vadd.f32 %v75, %v98
    %v100 = vrot.slane %v99, 2
    %v101 = vadd.f32 %v99, %v100
    %v102 = vrot.slane %v101, 1
    %v103 = vadd.f32 %v101, %v102
    %v104 = vrot.slane %v77, 4
    %v105 = vadd.f32 %v77, %v104
    %v106 = vrot.slane %v105, 2
    %v107 = vadd.f32 %v105, %v106
    %v108 = vrot.slane %v107, 1
    %v109 = vadd.f32 %v107, %v108
    %v110 = vrot.slane %v79, 4
    %v111 = vadd.f32 %v79, %v110
    %v112 = vrot.slane %v111, 2
    %v113 = vadd.f32 %v111, %v112
    %v114 = vrot.slane %v113, 1
    %v115 = vadd.f32 %v113, %v114
    %v116 = vrot.slane %v81, 4
    %v117 = vadd.f32 %v81, %v116
    %v118 = vrot.slane %v117, 2
    %v119 = vadd.f32 %v117, %v118
    %v120 = vrot.slane %v119, 1
    %v121 = vadd.f32 %v119, %v120
    %v122 = vrot.slane %v83, 4
    %v123 = vadd.f32 %v83, %v122
    %v124 = vrot.slane %v123, 2
    %v125 = vadd.f32 %v123, %v124
    %v126 = vrot.slane %v125, 1
    %v127 = vadd.f32 %v125, %v126
    %v128 = vrot.slane %v85, 4
    %v129 = vadd.f32 %v85, %v128
    %v130 = vrot.slane %v129, 2
    %v131 = vadd.f32 %v129, %v130
    %v132 = vrot.slane %v131, 1
    %v133 = vadd.f32 %v131, %v132
    %v134 = vmul.f32 %v91, 0.0009765625
    %v135 = vmul.f32 %v97, 0.0009765625
    %v136 = vmul.f32 %v103, 0.0009765625
    %v137 = vmul.f32 %v109, 0.0009765625
    %v138 = vmul.f32 %v115, 0.0009765625
    %v139 = vmul.f32 %v121, 0.0009765625
    %v140 = vmul.f32 %v127, 0.0009765625
    %v141 = vmul.f32 %v133, 0.0009765625
    %v142 = vsub.f32 %v62, %v134
    %v143 = vsub.f32 %v63, %v135
    %v144 = vsub.f32 %v64, %v136
    %v145 = vsub.f32 %v65, %v137
    %v146 = vsub.f32 %v66, %v138
    %v147 = vsub.f32 %v67, %v139
    %v148 = vsub.f32 %v68, %v140
    %v149 = vsub.f32 %v69, %v141
    %v150 = vand.u32 2147483647, %v142
    %v151 = vand.u32 2147483647, %v143
    %v152 = vand.u32 2147483647, %v144
    %v153 = vand.u32 2147483647, %v145
    %v154 = vand.u32 2147483647, %v146
    %v155 = vand.u32 2147483647, %v147
    %v156 = vand.u32 2147483647, %v148
    %v157 = vand.u32 2147483647, %v149
    %vm158 = vcmp.gt.f32.partialorder %v150, 0.01
    %vm159 = vcmp.gt.f32.partialorder %v151, 0.01
    %vm160 = vcmp.gt.f32.partialorder %v152, 0.01
    %vm161 = vcmp.gt.f32.partialorder %v153, 0.01
    %vm162 = vcmp.gt.f32.partialorder %v154, 0.01
    %vm163 = vcmp.gt.f32.partialorder %v155, 0.01
    %vm164 = vcmp.gt.f32.partialorder %v156, 0.01
    %vm165 = vcmp.gt.f32.partialorder %v157, 0.01
    %v166 = vsel %vm158, %v142, 0.0
    %v167 = vsel %vm159, %v143, 0.0
    %v168 = vsel %vm160, %v144, 0.0
    %v169 = vsel %vm161, %v145, 0.0
    %v170 = vsel %vm162, %v146, 0.0
    %v171 = vsel %vm163, %v147, 0.0
    %v172 = vsel %vm164, %v148, 0.0
    %v173 = vsel %vm165, %v149, 0.0
    %v174 = vrot.slane %v166, 4
    %v175 = vadd.f32 %v166, %v174
    %v176 = vrot.slane %v175, 2
    %v177 = vadd.f32 %v175, %v176
    %v178 = vrot.slane %v177, 1
    %v179 = vadd.f32 %v177, %v178
    %v180 = vrot.slane %v167, 4
    %v181 = vadd.f32 %v167, %v180
    %v182 = vrot.slane %v181, 2
    %v183 = vadd.f32 %v181, %v182
    %v184 = vrot.slane %v183, 1
    %v185 = vadd.f32 %v183, %v184
    %v186 = vrot.slane %v168, 4
    %v187 = vadd.f32 %v168, %v186
    %v188 = vrot.slane %v187, 2
    %v189 = vadd.f32 %v187, %v188
    %v190 = vrot.slane %v189, 1
    %v191 = vadd.f32 %v189, %v190
    %v192 = vrot.slane %v169, 4
    %v193 = vadd.f32 %v169, %v192
    %v194 = vrot.slane %v193, 2
    %v195 = vadd.f32 %v193, %v194
    %v196 = vrot.slane %v195, 1
    %v197 = vadd.f32 %v195, %v196
    %v198 = vrot.slane %v170, 4
    %v199 = vadd.f32 %v170, %v198
    %v200 = vrot.slane %v199, 2
    %v201 = vadd.f32 %v199, %v200
    %v202 = vrot.slane %v201, 1
    %v203 = vadd.f32 %v201, %v202
    %v204 = vrot.slane %v171, 4
    %v205 = vadd.f32 %v171, %v204
    %v206 = vrot.slane %v205, 2
    %v207 = vadd.f32 %v205, %v206
    %v208 = vrot.slane %v207, 1
    %v209 = vadd.f32 %v207, %v208
    %v210 = vrot.slane %v172, 4
    %v211 = vadd.f32 %v172, %v210
    %v212 = vrot.slane %v211, 2
    %v213 = vadd.f32 %v211, %v212
    %v214 = vrot.slane %v213, 1
    %v215 = vadd.f32 %v213, %v214
    %v216 = vrot.slane %v173, 4
    %v217 = vadd.f32 %v173, %v216
    %v218 = vrot.slane %v217, 2
    %v219 = vadd.f32 %v217, %v218
    %v220 = vrot.slane %v219, 1
    %v221 = vadd.f32 %v219, %v220
    %v222 = vld [vmem:[#allocation5] sm:$0xff]
    %v223 = vld [vmem:[#allocation5 + $0x8] sm:$0xff]
    %v224 = vld [vmem:[#allocation5 + $0x10] sm:$0xff]
    %v225 = vld [vmem:[#allocation5 + $0x18] sm:$0xff]
    %v226 = vld [vmem:[#allocation5 + $0x20] sm:$0xff]
    %v227 = vld [vmem:[#allocation5 + $0x28] sm:$0xff]
    %v228 = vld [vmem:[#allocation5 + $0x30] sm:$0xff]
    %v229 = vld [vmem:[#allocation5 + $0x38] sm:$0xff]
    %v230 = vld [vmem:[#allocation5 + $0x40] sm:$0xff]
    %v231 = vld [vmem:[#allocation5 + $0x48] sm:$0xff]
    %v232 = vld [vmem:[#allocation5 + $0x50] sm:$0xff]
    %v233 = vld [vmem:[#allocation5 + $0x58] sm:$0xff]
    %v234 = vld [vmem:[#allocation5 + $0x60] sm:$0xff]
    %v235 = vld [vmem:[#allocation5 + $0x68] sm:$0xff]
    %v236 = vld [vmem:[#allocation5 + $0x70] sm:$0xff]
    %v237 = vld [vmem:[#allocation5 + $0x78] sm:$0xff]
    %v238 = vld [vmem:[%s2] sm:$0x1]
    %v240 = vlaneseq
    %v241 = vshrl.u32 %v240, 7
    %v242 = vsub.s32 0, %v241
    %v243 = vrot.slane %v238, %v242
    %vm253 = vcmask 1041409
    %v254 = vsel %vm253, %v185, %v179
    %vm255 = vcmask 1042434
    %v256 = vsel %vm255, %v191, %v254
    %vm257 = vcmask 1043459
    %v258 = vsel %vm257, %v197, %v256
    %vm259 = vcmask 1044484
    %v260 = vsel %vm259, %v203, %v258
    %vm261 = vcmask 1045509
    %v262 = vsel %vm261, %v209, %v260
    %vm263 = vcmask 1046534
    %v264 = vsel %vm263, %v215, %v262
    %vm265 = vcmask 1047559
    %v266 = vsel %vm265, %v221, %v264
    %268 = vmatprep.subr.mxu0 0.0
    %269 = vmatpush1.msra.mxu0 %v222
    %270 = vmatprep.subr.mxu0 0.0
    %271 = vmatpush1.msra.mxu0 %v223
    %272 = vmatprep.subr.mxu0 0.0
    %273 = vmatpush1.msra.mxu0 %v224
    %274 = vmatprep.subr.mxu0 0.0
    %275 = vmatpush1.msra.mxu0 %v225
    %276 = vmatprep.subr.mxu0 0.0
    %277 = vmatpush1.msra.mxu0 %v226
    %278 = vmatprep.subr.mxu0 0.0
    %279 = vmatpush1.msra.mxu0 %v227
    %280 = vmatprep.subr.mxu0 0.0
    %281 = vmatpush1.msra.mxu0 %v228
    %282 = vmatprep.subr.mxu0 0.0
    %283 = vmatpush1.msra.mxu0 %v229
    %284 = vmatprep.subr.mxu0 0.0
    %285 = vmatpush1.msra.mxu0 %v230
    %286 = vmatprep.subr.mxu0 0.0
    %287 = vmatpush1.msra.mxu0 %v231
    %288 = vmatprep.subr.mxu0 0.0
    %289 = vmatpush1.msra.mxu0 %v232
    %290 = vmatprep.subr.mxu0 0.0
    %291 = vmatpush1.msra.mxu0 %v233
    %292 = vmatprep.subr.mxu0 0.0
    %293 = vmatpush1.msra.mxu0 %v234
    %294 = vmatprep.subr.mxu0 0.0
    %295 = vmatpush1.msra.mxu0 %v235
    %296 = vmatprep.subr.mxu0 0.0
    %297 = vmatpush1.msra.mxu0 %v236
    %298 = vmatprep.subr.mxu0 0.0
    %299 = vmatpush1.msra.mxu0 %v237
    %300 = vmatprep.subr.mxu0 0.0
    %301 = vmatpush1.msra.mxu0 0.0
    %302 = vmatprep.subr.mxu0 0.0
    %303 = vmatpush1.msra.mxu0 0.0
    %304 = vmatprep.subr.mxu0 0.0
    %305 = vmatpush1.msra.mxu0 0.0
    %306 = vmatprep.subr.mxu0 0.0
    %307 = vmatpush1.msra.mxu0 0.0
    %308 = vmatprep.subr.mxu0 0.0
    %309 = vmatpush1.msra.mxu0 0.0
    %310 = vmatprep.subr.mxu0 0.0
    %311 = vmatpush1.msra.mxu0 0.0
    %312 = vmatprep.subr.mxu0 0.0
    %313 = vmatpush1.msra.mxu0 0.0
    %314 = vmatprep.subr.mxu0 0.0
    %315 = vmatpush1.msra.mxu0 0.0
    %316 = vmatprep.subr.mxu0 0.0
    %317 = vmatpush1.msra.mxu0 0.0
    %318 = vmatprep.subr.mxu0 0.0
    %319 = vmatpush1.msra.mxu0 0.0
    %320 = vmatprep.subr.mxu0 0.0
    %321 = vmatpush1.msra.mxu0 0.0
    %322 = vmatprep.subr.mxu0 0.0
    %323 = vmatpush1.msra.mxu0 0.0
    %324 = vmatprep.subr.mxu0 0.0
    %325 = vmatpush1.msra.mxu0 0.0
    %326 = vmatprep.subr.mxu0 0.0
    %327 = vmatpush1.msra.mxu0 0.0
    %328 = vmatprep.subr.mxu0 0.0
    %329 = vmatpush1.msra.mxu0 0.0
    %330 = vmatprep.subr.mxu0 0.0
    %331 = vmatpush1.msra.mxu0 0.0
    %332 = vmatprep.mubr.f32.mxu0 0.0
    %333 = vmatmul.mubr.f32.gmra.mrb[0].mxu0 %v266
    %v334 = vpop.f32.mrb[0].mxu0
    %v335 = vadd.f32 %v243, %v334
    %v336 = vpop.f32.mrb[0].mxu0
    %337 = vdwg.mxu0
    %v338 = vmax.f32 %v335, 0.0
    %v339 = vld [vmem:[#allocation7] sm:$0xff]
    %v340 = vld [vmem:[#allocation7 + $0x8] sm:$0xff]
    %v341 = vld [vmem:[#allocation7 + $0x10] sm:$0xff]
    %v342 = vld [vmem:[#allocation7 + $0x18] sm:$0xff]
    %v343 = vld [vmem:[#allocation7 + $0x20] sm:$0xff]
    %v344 = vld [vmem:[#allocation7 + $0x28] sm:$0xff]
    %v345 = vld [vmem:[#allocation7 + $0x30] sm:$0xff]
    %v346 = vld [vmem:[#allocation7 + $0x38] sm:$0xff]
    %v347 = vld [vmem:[#allocation7 + $0x40] sm:$0xff]
    %v348 = vld [vmem:[#allocation7 + $0x48] sm:$0xff]
    %v349 = vld [vmem:[#allocation7 + $0x50] sm:$0xff]
    %v350 = vld [vmem:[#allocation7 + $0x58] sm:$0xff]
    %v351 = vld [vmem:[#allocation7 + $0x60] sm:$0xff]
    %v352 = vld [vmem:[#allocation7 + $0x68] sm:$0xff]
    %v353 = vld [vmem:[#allocation7 + $0x70] sm:$0xff]
    %v354 = vld [vmem:[#allocation7 + $0x78] sm:$0xff]
    %v355 = vld [vmem:[%s4] sm:$0x1]
    %v357 = vlaneseq
    %v358 = vshrl.u32 %v357, 7
    %v359 = vsub.s32 0, %v358
    %v360 = vrot.slane %v355, %v359
    %362 = vmatprep.subr.mxu0 0.0
    %363 = vmatpush1.msra.mxu0 %v339
    %364 = vmatprep.subr.mxu0 0.0
    %365 = vmatpush1.msra.mxu0 %v340
    %366 = vmatprep.subr.mxu0 0.0
    %367 = vmatpush1.msra.mxu0 %v341
    %368 = vmatprep.subr.mxu0 0.0
    %369 = vmatpush1.msra.mxu0 %v342
    %370 = vmatprep.subr.mxu0 0.0
    %371 = vmatpush1.msra.mxu0 %v343
    %372 = vmatprep.subr.mxu0 0.0
    %373 = vmatpush1.msra.mxu0 %v344
    %374 = vmatprep.subr.mxu0 0.0
    %375 = vmatpush1.msra.mxu0 %v345
    %376 = vmatprep.subr.mxu0 0.0
    %377 = vmatpush1.msra.mxu0 %v346
    %378 = vmatprep.subr.mxu0 0.0
    %379 = vmatpush1.msra.mxu0 %v347
    %380 = vmatprep.subr.mxu0 0.0
    %381 = vmatpush1.msra.mxu0 %v348
    %382 = vmatprep.subr.mxu0 0.0
    %383 = vmatpush1.msra.mxu0 %v349
    %384 = vmatprep.subr.mxu0 0.0
    %385 = vmatpush1.msra.mxu0 %v350
    %386 = vmatprep.subr.mxu0 0.0
    %387 = vmatpush1.msra.mxu0 %v351
    %388 = vmatprep.subr.mxu0 0.0
    %389 = vmatpush1.msra.mxu0 %v352
    %390 = vmatprep.subr.mxu0 0.0
    %391 = vmatpush1.msra.mxu0 %v353
    %392 = vmatprep.subr.mxu0 0.0
    %393 = vmatpush1.msra.mxu0 %v354
    %394 = vmatprep.subr.mxu0 0.0
    %395 = vmatpush1.msra.mxu0 0.0
    %396 = vmatprep.subr.mxu0 0.0
    %397 = vmatpush1.msra.mxu0 0.0
    %398 = vmatprep.subr.mxu0 0.0
    %399 = vmatpush1.msra.mxu0 0.0
    %400 = vmatprep.subr.mxu0 0.0
    %401 = vmatpush1.msra.mxu0 0.0
    %402 = vmatprep.subr.mxu0 0.0
    %403 = vmatpush1.msra.mxu0 0.0
    %404 = vmatprep.subr.mxu0 0.0
    %405 = vmatpush1.msra.mxu0 0.0
    %406 = vmatprep.subr.mxu0 0.0
    %407 = vmatpush1.msra.mxu0 0.0
    %408 = vmatprep.subr.mxu0 0.0
    %409 = vmatpush1.msra.mxu0 0.0
    %410 = vmatprep.subr.mxu0 0.0
    %411 = vmatpush1.msra.mxu0 0.0
    %412 = vmatprep.subr.mxu0 0.0
    %413 = vmatpush1.msra.mxu0 0.0
    %414 = vmatprep.subr.mxu0 0.0
    %415 = vmatpush1.msra.mxu0 0.0
    %416 = vmatprep.subr.mxu0 0.0
    %417 = vmatpush1.msra.mxu0 0.0
    %418 = vmatprep.subr.mxu0 0.0
    %419 = vmatpush1.msra.mxu0 0.0
    %420 = vmatprep.subr.mxu0 0.0
    %421 = vmatpush1.msra.mxu0 0.0
    %422 = vmatprep.subr.mxu0 0.0
    %423 = vmatpush1.msra.mxu0 0.0
    %424 = vmatprep.subr.mxu0 0.0
    %425 = vmatpush1.msra.mxu0 0.0
    %426 = vmatprep.mubr.f32.mxu0 0.0
    %427 = vmatmul.mubr.f32.gmra.mrb[0].mxu0 %v338
    %v428 = vpop.f32.mrb[0].mxu0
    %v429 = vadd.f32 %v360, %v428
    %v430 = vpop.f32.mrb[0].mxu0
    %431 = vdwg.mxu0
    %432 = vst [vmem:[#allocation8] sm:$0xff] %v429
    // Predicated region
    $region34: #{tpu_custom_call.1} parent=1 // pred_check
      _
    $region35: #{tpu_custom_call.1} parent=1 // pred_check_branch
      %434 = sbr.rel (0) target = $region37
    $region36: #{tpu_custom_call.1} parent=1 // pred_region
      %s436 = ssub.s32 128, 128
      %437 = vsyncadd [#allocation4], %s436
      %s439 = sshll.u32 [#allocation8], 4
      %s440 = int_to_ptr.vmem [resolvable:$true] %s439
      %442 = dma.vmem_to_hbm [thread:$0]  %s440, 128, %s5, [#allocation4]
    $region37: #{tpu_custom_call.1} parent=1 // pred_fallthru
      _
    // Predicated region
    $region38: #{tpu_custom_call.1} parent=1 // pred_check
      _
    $region39: #{tpu_custom_call.1} parent=1 // pred_check_branch
      %444 = sbr.rel (0) target = $region41
    $region40: #{tpu_custom_call.1} parent=1 // pred_region
      %445 = dma.done [#allocation4], 128
    $region41: #{tpu_custom_call.1} parent=1 // pred_fallthru
      _
    %446 = vsyncpa [#allocation3], 1
    %447 = vsyncpa [#allocation6], 1
    %448 = vsyncpa [#allocation4], 1

</llo_original>
